<compile_context>
chip_gen: v5e
topology: v5e:2x2
jax: 0.10.0
libtpu: 0.0.40
codegen_flags: <defaults>
</compile_context>

<pallas_src>
import functools

import jax
import jax.numpy as jnp
import numpy as np
from jax.experimental import pallas as pl
from jax.experimental.pallas import tpu as pltpu

_LANES = 128


def _per_step_input_budget_bytes():
    """Total input bytes per grid step (both operands), generation-gated.

    Double-buffered this becomes 2x, which must stay under the scoped-VMEM
    default: 16 MiB on v5e, 32 MiB on v6e/v7x.
    """
    try:
        kind = jax.devices()[0].device_kind.lower()
    except Exception:  # pragma: no cover - defensive, e.g. no devices yet
        kind = ""
    if ("v6" in kind) or ("v7" in kind):
        return 8 * 1024 * 1024   # 2 bufs -> 16 MiB, under the 32 MiB default
    return 4 * 1024 * 1024       # v5e & older: 2 bufs -> 8 MiB, under 16 MiB


def _sublane_granule(itemsize):
    # Packed dtypes occupy more sublanes per vreg; row tiles must respect it.
    return {4: 8, 2: 16, 1: 32}.get(int(itemsize), 8)


def _focal_kernel(x_ref, t_ref, psum_ref, *cnt_refs, gamma, ignore_index,
                  total_rows, tile_rows, total_batch, batch_block,
                  needs_row_mask, needs_batch_mask, fold_rows, approx_recip):
    """One tile of class-1 logits + targets per grid step.

    x_ref/t_ref are (tile_rows, lanes) or (batch_block, tile_rows, lanes) in
    their native dtypes.  psum_ref (and cnt_refs[0] for reduction='mean') are
    per-batch-block f32 VMEM accumulator blocks revisited across the row-tile
    axis; the tiny cross-lane reduction happens in the wrapper.
    """
    r = pl.program_id(1)

    @pl.when(r == 0)
    def _():
        psum_ref[...] = jnp.zeros_like(psum_ref)
        if cnt_refs:
            cnt_refs[0][...] = jnp.zeros_like(cnt_refs[0])

    x = x_ref[...].astype(jnp.float32)          # cast per tile (bf16 stays bf16 in HBM)
    t = t_ref[...]                              # native int dtype

    # Mask is built BEFORE any accumulation (correctness for ragged / OOB tiles).
    mask = t != ignore_index
    if needs_row_mask:                          # ragged last row tile
        row_ax = x.ndim - 2
        ridx = r * tile_rows + jax.lax.broadcasted_iota(jnp.int32, x.shape, row_ax)
        mask = mask & (ridx < total_rows)
    if needs_batch_mask:                        # ragged last batch block
        b = pl.program_id(0)
        bidx = b * batch_block + jax.lax.broadcasted_iota(jnp.int32, x.shape, 0)
        mask = mask & (bidx < total_batch)

    tf = t.astype(jnp.float32)
    # Signed logit: z = +x for target 1, -x for target 0 (exact for binary
    # targets, which is what this module's `pt = where(targets == 1, ...)`
    # implies).  Ignored pixels give finite garbage and are masked out.
    z = x * (tf + tf - 1.0)
    e = jnp.exp(-jnp.abs(z))                            # shared EUP exp
    ce = jnp.maximum(-z, 0.0) + jnp.log1p(e)            # stable softplus(-z) == BCE
    inv = pl.reciprocal(1.0 + e, approx=approx_recip)   # EUP reciprocal
    one_minus_pt = jnp.where(z <= 0.0, inv, e * inv)    # sigmoid(-z) == 1 - pt

    g = float(gamma)
    u = one_minus_pt
    if g == 2.0:                         # default: plain VPU multiply, no pow
        focal = u * u
    elif g == float(int(g)) and 0 <= int(g) <= 4:
        focal = jnp.ones_like(u)
        for _ in range(int(g)):
            focal = focal * u
    else:
        focal = jnp.power(u, jnp.float32(g))

    # alpha is applied once to the final scalar in the wrapper.
    loss = jnp.where(mask, focal * ce, 0.0)
    if cnt_refs:
        cnt = mask.astype(jnp.float32)

    if loss.ndim == 3:                   # fold the batch-block axis (VPU adds)
        loss = loss.sum(axis=0)
        if cnt_refs:
            cnt = cnt.sum(axis=0)
    if fold_rows:                        # sublane fold: (tile_rows, L) -> (8, L)
        loss = loss.reshape(-1, 8, loss.shape[-1]).sum(axis=0)
        if cnt_refs:
            cnt = cnt.reshape(-1, 8, cnt.shape[-1]).sum(axis=0)

    psum_ref[...] += loss
    if cnt_refs:
        cnt_refs[0][...] += cnt


def focal_loss(logits, targets, *, alpha=0.25, gamma=2.0, reduction="mean",
               ignore_index=255, approx_recip=True,
               _max_tile_rows=None, _max_batch_block=None):
    """Pallas implementation of FocalLoss.forward (reduction in {'mean','sum'})."""
    # TODO(synk): reduction='none' returns a data-dependent-shaped masked
    # per-pixel loss tensor, not expressible with static Pallas output shapes.
    assert reduction in ("mean", "sum")
    N, C, H, W = logits.shape
    assert targets.shape == (N, H, W)
    assert C >= 2, "FocalLoss reads the class-1 channel of the logits"

    lanes = _LANES
    hw = H * W
    x_itemsize = jnp.dtype(logits.dtype).itemsize
    t_itemsize = jnp.dtype(targets.dtype).itemsize
    sub = max(_sublane_granule(x_itemsize), _sublane_granule(t_itemsize))

    if hw % lanes == 0:
        # Lane-dense, free reshape; channel selected by the BlockSpec index_map.
        rows = hw // lanes
        x_in = logits.reshape(N, C, rows, lanes)
        t_in = targets.reshape(N, rows, lanes)
        x_is_4d = True
    else:
        # Fallback: one cheap pad pass over just the class-1 slice (1/C of the
        # logits) to a lane-dense layout; padded pixels get ignore_index.
        rows = pl.cdiv(hw, lanes)
        pad = rows * lanes - hw
        x1 = jnp.pad(logits[:, 1, :, :].reshape(N, hw), ((0, 0), (0, pad)))
        x_in = x1.reshape(N, rows, lanes)
        t_in = jnp.pad(targets.reshape(N, hw), ((0, 0), (0, pad)),
                       constant_values=int(ignore_index)).reshape(N, rows, lanes)
        x_is_4d = False

    # Per-step DMA budget -> row-tile budget (native input dtypes).
    budget_bytes = _per_step_input_budget_bytes()
    per_row_bytes = lanes * (x_itemsize + t_itemsize)
    rows_budget = max(sub, (budget_bytes // per_row_bytes) // sub * sub)
    if _max_tile_rows is not None:               # test/debug knob
        rows_budget = max(sub, min(rows_budget, (int(_max_tile_rows) // sub) * sub))

    if rows >= rows_budget or N == 1:
        # Mode A: one image per step, tile over rows.
        nb = 1
        tile_rows = min(rows, rows_budget)
        num_r = pl.cdiv(rows, tile_rows)
    else:
        # Mode B: whole (small) images, several per step.
        tile_rows = rows
        nb = max(1, min(N, rows_budget // max(rows, 1)))
        if _max_batch_block is not None:         # test/debug knob
            nb = max(1, min(nb, int(_max_batch_block)))
        num_r = 1
    num_b = pl.cdiv(N, nb)

    needs_row_mask = (rows % tile_rows) != 0
    needs_batch_mask = (nb > 1) and (N % nb != 0)
    if tile_rows % 8 == 0:
        acc_h, fold_rows = 8, tile_rows > 8
    else:
        acc_h, fold_rows = tile_rows, False
    need_count = reduction == "mean"

    kernel = functools.partial(
        _focal_kernel, gamma=float(gamma), ignore_index=int(ignore_index),
        total_rows=rows, tile_rows=tile_rows, total_batch=N, batch_block=nb,
        needs_row_mask=needs_row_mask, needs_batch_mask=needs_batch_mask,
        fold_rows=fold_rows, approx_recip=bool(approx_recip))

    # BlockSpecs: class-1 channel via index_map (no XLA slice on the fast path).
    if x_is_4d:
        if nb > 1:
            x_spec = pl.BlockSpec((nb, None, tile_rows, lanes),
                                  lambda b, r: (b, 1, r, 0))
        else:
            x_spec = pl.BlockSpec((None, None, tile_rows, lanes),
                                  lambda b, r: (b, 1, r, 0))
    else:
        if nb > 1:
            x_spec = pl.BlockSpec((nb, tile_rows, lanes), lambda b, r: (b, r, 0))
        else:
            x_spec = pl.BlockSpec((None, tile_rows, lanes), lambda b, r: (b, r, 0))
    if nb > 1:
        t_spec = pl.BlockSpec((nb, tile_rows, lanes), lambda b, r: (b, r, 0))
    else:
        t_spec = pl.BlockSpec((None, tile_rows, lanes), lambda b, r: (b, r, 0))

    out_shapes = [jax.ShapeDtypeStruct((num_b, acc_h, lanes), jnp.float32)]
    out_specs = [pl.BlockSpec((None, acc_h, lanes), lambda b, r: (b, 0, 0))]
    if need_count:
        out_shapes.append(jax.ShapeDtypeStruct((num_b, acc_h, lanes), jnp.float32))
        out_specs.append(pl.BlockSpec((None, acc_h, lanes), lambda b, r: (b, 0, 0)))

    n_elem = N * H * W
    cost = pl.CostEstimate(
        flops=20 * n_elem,
        transcendentals=3 * n_elem,
        bytes_accessed=int(n_elem * (x_itemsize + t_itemsize)
                           + len(out_shapes) * num_b * acc_h * lanes * 4))

    outs = pl.pallas_call(
        kernel,
        out_shape=tuple(out_shapes),
        grid=(num_b, num_r),
        in_specs=[x_spec, t_spec],
        out_specs=tuple(out_specs),
        compiler_params=pltpu.CompilerParams(
            dimension_semantics=("parallel", "arbitrary")),
        cost_estimate=cost,
    )(x_in, t_in)

    loss_sum = float(alpha) * jnp.sum(outs[0])
    if reduction == "mean":
        # NB: like the PyTorch reference, NaN if every pixel is ignored.
        return loss_sum / jnp.sum(outs[1])
    return loss_sum


def _focal_loss_ref(logits, targets, *, alpha=0.25, gamma=2.0,
                    reduction="mean", ignore_index=255):
    """Pure-JAX reference mirroring the PyTorch module."""
    x = logits[:, 1, :, :].astype(jnp.float32)
    t = targets
    mask = t != ignore_index
    tf = t.astype(jnp.float32)
    ce = jnp.maximum(x, 0.0) - x * tf + jnp.log1p(jnp.exp(-jnp.abs(x)))
    p = jax.nn.sigmoid(x)
    pt = jnp.where(t == 1, p, 1.0 - p)
    loss = alpha * jnp.power(1.0 - pt, gamma) * ce
    loss = jnp.where(mask, loss, 0.0)
    if reduction == "mean":
        return jnp.sum(loss) / jnp.sum(mask.astype(jnp.float32))
    return jnp.sum(loss)


def _make_inputs(kx, kt, ki, shape, x_dtype, t_dtype, p_ignore=0.1):
    N, C, H, W = shape
    logits = jax.random.normal(kx, (N, C, H, W), dtype=jnp.float32).astype(x_dtype)
    targets = jax.random.bernoulli(kt, 0.5, (N, H, W)).astype(t_dtype)
    ign = jax.random.bernoulli(ki, p_ignore, (N, H, W))
    targets = jnp.where(ign, jnp.asarray(255, dtype=t_dtype), targets)
    return logits, targets


if __name__ == "__main__":
    key = jax.random.PRNGKey(0)
    ks = jax.random.split(key, 12)

    # Case 1: small lane-dense images (rows=2), f32 logits / i32 targets,
    # reduction='mean'  -> exercises the whole-image batch-block path.
    logits1, targets1 = _make_inputs(ks[0], ks[1], ks[2], (2, 4, 16, 16),
                                     jnp.float32, jnp.int32)
    out1 = jax.block_until_ready(focal_loss(logits1, targets1, reduction="mean"))
    ref1 = jax.block_until_ready(_focal_loss_ref(logits1, targets1))
    assert np.isclose(np.asarray(out1), np.asarray(ref1),
                      rtol=2e-3, atol=1e-6), (out1, ref1)

    # Case 2: native narrow dtypes (bf16 logits, uint8 targets), odd batch with
    # a forced batch block of 2 -> ragged batch mask; reduction='sum'.
    logits2, targets2 = _make_inputs(ks[3], ks[4], ks[5], (3, 3, 24, 64),
                                     jnp.bfloat16, jnp.uint8)
    out2 = jax.block_until_ready(
        focal_loss(logits2, targets2, reduction="sum", _max_batch_block=2))
    ref2 = jax.block_until_ready(
        _focal_loss_ref(logits2, targets2, reduction="sum"))
    assert np.isclose(np.asarray(out2), np.asarray(ref2),
                      rtol=2e-3, atol=1e-3), (out2, ref2)

    # Case 3: multi-row-tile accumulation with a ragged last row tile
    # (rows=20, forced 8-row tiles), reduction='mean'.
    logits3, targets3 = _make_inputs(ks[6], ks[7], ks[8], (2, 4, 40, 64),
                                     jnp.float32, jnp.int32)
    out3 = jax.block_until_ready(
        focal_loss(logits3, targets3, reduction="mean", _max_tile_rows=8))
    ref3 = jax.block_until_ready(_focal_loss_ref(logits3, targets3))
    assert np.isclose(np.asarray(out3), np.asarray(ref3),
                      rtol=2e-3, atol=1e-6), (out3, ref3)

    # Case 4: H*W not divisible by 128 -> lane-dense repack of the class-1
    # slice with ignore-padding; reduction='mean'.
    logits4, targets4 = _make_inputs(ks[9], ks[10], ks[11], (3, 4, 10, 10),
                                     jnp.float32, jnp.int32)
    out4 = jax.block_until_ready(focal_loss(logits4, targets4, reduction="mean"))
    ref4 = jax.block_until_ready(_focal_loss_ref(logits4, targets4))
    assert np.isclose(np.asarray(out4), np.asarray(ref4),
                      rtol=2e-3, atol=1e-6), (out4, ref4)

    print("KERNEL_OK")
</pallas_src>

<mosaic_0001>
module attributes {stable_mosaic.version = 11 : i64} {
  func.func @_focal_kernel(%arg0: i32, %arg1: i32, %arg2: memref<2x1x2x128xf32, #tpu.memory_space<vmem>>, %arg3: memref<2x2x128xi32, #tpu.memory_space<vmem>>, %arg4: memref<1x2x128xf32, #tpu.memory_space<vmem>>, %arg5: memref<1x2x128xf32, #tpu.memory_space<vmem>>) attributes {dimension_semantics = [#tpu.dimension_semantics<parallel>, #tpu.dimension_semantics<arbitrary>], iteration_bounds = array<i64: 1, 1>, scalar_prefetch = 0 : i64, scratch_operands = 0 : i64, tpu.core_type = #tpu.core_type<tc>, window_params = [{transform_indices = @transform_0, window_bounds = array<i64: 2, 1, 2, 128>}, {transform_indices = @transform_1, window_bounds = array<i64: 2, 2, 128>}, {transform_indices = @transform_2, window_bounds = array<i64: 1, 2, 128>}, {transform_indices = @transform_3, window_bounds = array<i64: 1, 2, 128>}]} {
    %c0_i32 = arith.constant 0 : i32
    %0 = arith.cmpi eq, %arg1, %c0_i32 : i32
    %1 = arith.extui %0 : i1 to i32
    %c0_i32_0 = arith.constant 0 : i32
    %2 = arith.cmpi ne, %1, %c0_i32_0 : i32
    scf.if %2 {
      %cst_27 = arith.constant 0.000000e+00 : f32
      %50 = vector.broadcast %cst_27 : f32 to vector<2x128xf32>
      %c0_28 = arith.constant 0 : index
      %c0_29 = arith.constant 0 : index
      %c0_30 = arith.constant 0 : index
      %51 = vector.load %arg4[%c0_28, %c0_29, %c0_30] : memref<1x2x128xf32, #tpu.memory_space<vmem>>, vector<1x2x128xf32>
      %52 = vector.shape_cast %51 : vector<1x2x128xf32> to vector<2x128xf32>
      %53 = vector.shape_cast %50 : vector<2x128xf32> to vector<1x2x128xf32>
      tpu.vector_store %arg4[%c0_28, %c0_29, %c0_30], %53 {strides = array<i32>} : memref<1x2x128xf32, #tpu.memory_space<vmem>>, vector<1x2x128xf32>,
      %cst_31 = arith.constant 0.000000e+00 : f32
      %54 = vector.broadcast %cst_31 : f32 to vector<2x128xf32>
      %c0_32 = arith.constant 0 : index
      %c0_33 = arith.constant 0 : index
      %c0_34 = arith.constant 0 : index
      %55 = vector.load %arg5[%c0_32, %c0_33, %c0_34] : memref<1x2x128xf32, #tpu.memory_space<vmem>>, vector<1x2x128xf32>
      %56 = vector.shape_cast %55 : vector<1x2x128xf32> to vector<2x128xf32>
      %57 = vector.shape_cast %54 : vector<2x128xf32> to vector<1x2x128xf32>
      tpu.vector_store %arg5[%c0_32, %c0_33, %c0_34], %57 {strides = array<i32>} : memref<1x2x128xf32, #tpu.memory_space<vmem>>, vector<1x2x128xf32>,
    } else {
    }
    %c0 = arith.constant 0 : index
    %c0_1 = arith.constant 0 : index
    %c0_2 = arith.constant 0 : index
    %c0_3 = arith.constant 0 : index
    %3 = vector.load %arg2[%c0, %c0_1, %c0_2, %c0_3] : memref<2x1x2x128xf32, #tpu.memory_space<vmem>>, vector<2x1x2x128xf32>
    %4 = vector.shape_cast %3 : vector<2x1x2x128xf32> to vector<2x2x128xf32>
    %c0_4 = arith.constant 0 : index
    %c0_5 = arith.constant 0 : index
    %c0_6 = arith.constant 0 : index
    %5 = vector.load %arg3[%c0_4, %c0_5, %c0_6] : memref<2x2x128xi32, #tpu.memory_space<vmem>>, vector<2x2x128xi32>
    %c255_i32 = arith.constant 255 : i32
    %6 = vector.broadcast %c255_i32 : i32 to vector<2x2x128xi32>
    %7 = arith.cmpi ne, %5, %6 : vector<2x2x128xi32>
    %8 = arith.sitofp %5 : vector<2x2x128xi32> to vector<2x2x128xf32>
    %9 = arith.addf %8, %8 : vector<2x2x128xf32>
    %cst = arith.constant 1.000000e+00 : f32
    %10 = vector.broadcast %cst : f32 to vector<2x2x128xf32>
    %11 = arith.subf %9, %10 : vector<2x2x128xf32>
    %12 = arith.mulf %4, %11 : vector<2x2x128xf32>
    %13 = math.absf %12 : vector<2x2x128xf32>
    %cst_7 = arith.constant 0.000000e+00 : f32
    %14 = vector.broadcast %cst_7 : f32 to vector<2x2x128xf32>
    %15 = arith.subf %14, %13 : vector<2x2x128xf32>
    %16 = math.exp %15 : vector<2x2x128xf32>
    %cst_8 = arith.constant 0.000000e+00 : f32
    %17 = vector.broadcast %cst_8 : f32 to vector<2x2x128xf32>
    %18 = arith.subf %17, %12 : vector<2x2x128xf32>
    %cst_9 = arith.constant 0.000000e+00 : f32
    %19 = vector.broadcast %cst_9 : f32 to vector<2x2x128xf32>
    %20 = arith.maximumf %18, %19 : vector<2x2x128xf32>
    %21 = math.log1p %16 : vector<2x2x128xf32>
    %22 = arith.addf %20, %21 : vector<2x2x128xf32>
    %cst_10 = arith.constant 1.000000e+00 : f32
    %23 = vector.broadcast %cst_10 : f32 to vector<2x2x128xf32>
    %24 = arith.addf %23, %16 : vector<2x2x128xf32>
    %25 = tpu.reciprocal %24 {approx = true} : vector<2x2x128xf32> -> vector<2x2x128xf32>
    %cst_11 = arith.constant 0.000000e+00 : f32
    %26 = vector.broadcast %cst_11 : f32 to vector<2x2x128xf32>
    %27 = arith.cmpf ole, %12, %26 : vector<2x2x128xf32>
    %28 = arith.mulf %16, %25 : vector<2x2x128xf32>
    %29 = arith.select %27, %25, %28 : vector<2x2x128xi1>, vector<2x2x128xf32>
    %30 = arith.mulf %29, %29 : vector<2x2x128xf32>
    %31 = arith.mulf %30, %22 : vector<2x2x128xf32>
    %cst_12 = arith.constant 0.000000e+00 : f32
    %32 = vector.broadcast %cst_12 : f32 to vector<2x2x128xf32>
    %33 = arith.select %7, %31, %32 : vector<2x2x128xi1>, vector<2x2x128xf32>
    %34 = arith.extui %7 : vector<2x2x128xi1> to vector<2x2x128xi32>
    %35 = arith.sitofp %34 : vector<2x2x128xi32> to vector<2x2x128xf32>
    %cst_13 = arith.constant dense<0.000000e+00> : vector<2x128xf32>
    %36 = vector.multi_reduction <add>, %33, %cst_13 [0] : vector<2x2x128xf32> to vector<2x128xf32>
    %cst_14 = arith.constant dense<0.000000e+00> : vector<2x128xf32>
    %37 = vector.multi_reduction <add>, %35, %cst_14 [0] : vector<2x2x128xf32> to vector<2x128xf32>
    %c0_15 = arith.constant 0 : index
    %c0_16 = arith.constant 0 : index
    %c0_17 = arith.constant 0 : index
    %38 = vector.load %arg4[%c0_15, %c0_16, %c0_17] : memref<1x2x128xf32, #tpu.memory_space<vmem>>, vector<1x2x128xf32>
    %39 = vector.shape_cast %38 : vector<1x2x128xf32> to vector<2x128xf32>
    %40 = arith.addf %39, %36 : vector<2x128xf32>
    %c0_18 = arith.constant 0 : index
    %c0_19 = arith.constant 0 : index
    %c0_20 = arith.constant 0 : index
    %41 = vector.load %arg4[%c0_18, %c0_19, %c0_20] : memref<1x2x128xf32, #tpu.memory_space<vmem>>, vector<1x2x128xf32>
    %42 = vector.shape_cast %41 : vector<1x2x128xf32> to vector<2x128xf32>
    %43 = vector.shape_cast %40 : vector<2x128xf32> to vector<1x2x128xf32>
    tpu.vector_store %arg4[%c0_18, %c0_19, %c0_20], %43 {strides = array<i32>} : memref<1x2x128xf32, #tpu.memory_space<vmem>>, vector<1x2x128xf32>,
    %c0_21 = arith.constant 0 : index
    %c0_22 = arith.constant 0 : index
    %c0_23 = arith.constant 0 : index
    %44 = vector.load %arg5[%c0_21, %c0_22, %c0_23] : memref<1x2x128xf32, #tpu.memory_space<vmem>>, vector<1x2x128xf32>
    %45 = vector.shape_cast %44 : vector<1x2x128xf32> to vector<2x128xf32>
    %46 = arith.addf %45, %37 : vector<2x128xf32>
    %c0_24 = arith.constant 0 : index
    %c0_25 = arith.constant 0 : index
    %c0_26 = arith.constant 0 : index
    %47 = vector.load %arg5[%c0_24, %c0_25, %c0_26] : memref<1x2x128xf32, #tpu.memory_space<vmem>>, vector<1x2x128xf32>
    %48 = vector.shape_cast %47 : vector<1x2x128xf32> to vector<2x128xf32>
    %49 = vector.shape_cast %46 : vector<2x128xf32> to vector<1x2x128xf32>
    tpu.vector_store %arg5[%c0_24, %c0_25, %c0_26], %49 {strides = array<i32>} : memref<1x2x128xf32, #tpu.memory_space<vmem>>, vector<1x2x128xf32>,
    return
  }
  func.func @transform_0(%arg0: i32, %arg1: i32) -> (i32, i32, i32, i32) {
    %c1_i32 = arith.constant 1 : i32
    %c0_i32 = arith.constant 0 : i32
    %c0_i32_0 = arith.constant 0 : i32
    return %arg0, %c1_i32, %arg1, %c0_i32 : i32, i32, i32, i32
  }
  func.func @transform_1(%arg0: i32, %arg1: i32) -> (i32, i32, i32) {
    %c0_i32 = arith.constant 0 : i32
    %c0_i32_0 = arith.constant 0 : i32
    return %arg0, %arg1, %c0_i32 : i32, i32, i32
  }
  func.func @transform_2(%arg0: i32, %arg1: i32) -> (i32, i32, i32) {
    %c0_i32 = arith.constant 0 : i32
    %c0_i32_0 = arith.constant 0 : i32
    %c0_i32_1 = arith.constant 0 : i32
    return %arg0, %c0_i32, %c0_i32_0 : i32, i32, i32
  }
  func.func @transform_3(%arg0: i32, %arg1: i32) -> (i32, i32, i32) {
    %c0_i32 = arith.constant 0 : i32
    %c0_i32_0 = arith.constant 0 : i32
    %c0_i32_1 = arith.constant 0 : i32
    return %arg0, %c0_i32, %c0_i32_0 : i32, i32, i32
  }
}

</mosaic_0001>

<llo_original>
// kernel: tpu_custom_call.1
$region0: #{tpu_custom_call.1}
  #allocation0 [shape = 'u32[]', space=smem, size = 0x4, offset = 0x4, fixed_abs, tag = 'smem constant byte address 0x4 - core index']
  #allocation1 [shape = 'u32[72,128]{1,0:T(1,128)}', space=vmem, size = 0x9000, scoped, tag = 'internal scratch']
  %s0 = inlined_call_operand.hbm [shape: f32[2,4,2,128], index: 0, kind: input, shape index: {}]
  %s1 = inlined_call_operand.hbm [shape: s32[2,2,128], index: 1, kind: input, shape index: {}]
  %s2 = inlined_call_operand.hbm [shape: f32[1,2,128], index: 2, kind: output, shape index: {0}]
  %s3 = inlined_call_operand.hbm [shape: f32[1,2,128], index: 3, kind: output, shape index: {1}]
  %4 = xla_tuple %s2, %s3
  %s5 = sld [smem:[#allocation0]]
  $region38: #{tpu_custom_call.1} parent=0
    _
  %s7 = ssub.s32 1, %s5
  %s8 = scalar_select 0, %s7, %s5
  $region1: #{tpu_custom_call.1} parent=0
    #allocation2 [shape = 'u8[2048]{0}', space=vmem, size = 0x800, scoped, tag = 'input window, operand 0, single buffered']
    #allocation3 [shape = 's32[1]{0}', space=sflag, size = 0x4, scoped, tag = 'scoped memory for tpu_custom_call.1']
    #allocation4 [shape = 's32[1]{0}', space=sflag, size = 0x4, scoped, tag = 'scoped memory for tpu_custom_call.1']
    #allocation5 [shape = 'u8[2048]{0}', space=vmem, size = 0x800, scoped, tag = 'input window, operand 1, single buffered']
    #allocation6 [shape = 's32[1]{0}', space=sflag, size = 0x4, scoped, tag = 'scoped memory for tpu_custom_call.1']
    #allocation7 [shape = 'u8[1024]{0}', space=vmem, size = 0x400, scoped, tag = 'output window, operand 0, single buffered']
    #allocation8 [shape = 'u8[1024]{0}', space=vmem, size = 0x400, scoped, tag = 'output window, operand 1, single buffered']
    #allocation9 [shape = 's32[1]{0}', space=sflag, size = 0x4, scoped, tag = 'scoped memory for tpu_custom_call.1']
    %9 = vsyncpa [#allocation3], 0
    %10 = vsyncpa [#allocation6], 0
    %11 = vsyncpa [#allocation4], 0
    %12 = vsyncpa [#allocation9], 0
    // Predicated region
    $region2: #{tpu_custom_call.1} parent=1 // pred_check
      _
    $region3: #{tpu_custom_call.1} parent=1 // pred_check_branch
      %14 = sbr.rel (0) target = $region5
    $region4: #{tpu_custom_call.1} parent=1 // pred_region
      %16 = vsyncadd [#allocation3], 0
      %s17 = scalar_lea.hbm %s0, 2
      %s18 = sshll.u32 %s17, 4
      %s19 = int_to_ptr.hbm [resolvable:$true] %s18
      %s20 = sshll.u32 [#allocation2], 4
      %s21 = int_to_ptr.vmem [resolvable:$true] %s20
      %26 = dma.hbm_to_vmem [thread:$0]  %s19, 64, %s21, [#allocation3], 128, 32, 2
    $region5: #{tpu_custom_call.1} parent=1 // pred_fallthru
      _
    // Predicated region
    $region6: #{tpu_custom_call.1} parent=1 // pred_check
      _
    $region7: #{tpu_custom_call.1} parent=1 // pred_check_branch
      %28 = sbr.rel (0) target = $region9
    $region8: #{tpu_custom_call.1} parent=1 // pred_region
      %30 = vsyncadd [#allocation6], 0
      %s31 = sshll.u32 %s1, 4
      %s32 = int_to_ptr.hbm [resolvable:$true] %s31
      %s33 = sshll.u32 [#allocation5], 4
      %s34 = int_to_ptr.vmem [resolvable:$true] %s33
      %39 = dma.hbm_to_vmem [thread:$0]  %s32, 64, %s34, [#allocation6], 32, 32, 2
    $region9: #{tpu_custom_call.1} parent=1 // pred_fallthru
      _
    // Predicated region
    $region10: #{tpu_custom_call.1} parent=1 // pred_check
      _
    $region11: #{tpu_custom_call.1} parent=1 // pred_check_branch
      %41 = sbr.rel (0) target = $region13
    $region12: #{tpu_custom_call.1} parent=1 // pred_region
      %43 = dma.done [#allocation3], 64
    $region13: #{tpu_custom_call.1} parent=1 // pred_fallthru
      _
    // Predicated region
    $region14: #{tpu_custom_call.1} parent=1 // pred_check
      _
    $region15: #{tpu_custom_call.1} parent=1 // pred_check_branch
      %45 = sbr.rel (0) target = $region17
    $region16: #{tpu_custom_call.1} parent=1 // pred_region
      %47 = dma.done [#allocation6], 64
    $region17: #{tpu_custom_call.1} parent=1 // pred_fallthru
      _
    %p48 = scmp.eq.s32.totalorder 0, 0
    // Predicated region
    $region18: #{tpu_custom_call.1} parent=1 // pred_check
      %p49 = pneg %p48
    $region19: #{tpu_custom_call.1} parent=1 // pred_check_branch
      %51 = sbr.rel (%p49) target = $region21
    $region20: #{tpu_custom_call.1} parent=1 // pred_region
      %52 = vst [vmem:[#allocation7] sm:$0x3] 0.0
      %53 = vst [vmem:[#allocation8] sm:$0x3] 0.0
    $region21: #{tpu_custom_call.1} parent=1 // pred_fallthru
      _
    %v54 = vld [vmem:[#allocation2] sm:$0x3]
    %v55 = vld [vmem:[#allocation2 + $0x2] sm:$0x3]
    %v56 = vld [vmem:[#allocation5] sm:$0x3]
    %v57 = vld [vmem:[#allocation5 + $0x2] sm:$0x3]
    %vm58 = vcmp.ne.s32.totalorder %v56, 255
    %vm59 = vcmp.ne.s32.totalorder %v57, 255
    %v60 = vcvt.s32.f32 %v56
    %v61 = vcvt.s32.f32 %v57
    %v62 = vadd.f32 %v60, %v60
    %v63 = vadd.f32 %v61, %v61
    %v64 = vsub.f32 %v62, 1.0
    %v65 = vsub.f32 %v63, 1.0
    %v66 = vmul.f32 %v54, %v64
    %v67 = vmul.f32 %v55, %v65
    %v68 = vand.u32 2147483647, %v66
    %v69 = vand.u32 2147483647, %v67
    %v70 = vsub.f32 0.0, %v68
    %v71 = vsub.f32 0.0, %v69
    %v72 = vmul.f32 %v70, 1.442695
    %v73 = vpow.pop %v72
    %v74 = vmul.f32 %v71, 1.442695
    %v75 = vpow.pop %v74
    %v76 = vsub.f32 0.0, %v66
    %v77 = vsub.f32 0.0, %v67
    %v78 = vmax.f32 %v76, 0.0
    %v79 = vmax.f32 %v77, 0.0
    %v80 = vadd.f32 %v73, 1.0
    %v81 = vlog2.pop %v80
    %v82 = vmul.f32 %v81, 0.6931472
    %v83 = vmul.f32 -0.5, %v73
    %v84 = vadd.f32 %v83, 1.0
    %v85 = vmul.f32 %v84, %v73
    %v86 = vand.u32 2147483647, %v73
    %vm87 = vcmp.lt.f32.partialorder %v86, 0.0004427343
    %v88 = vsel %vm87, %v85, %v82
    %v89 = vadd.f32 %v75, 1.0
    %v90 = vlog2.pop %v89
    %v91 = vmul.f32 %v90, 0.6931472
    %v92 = vmul.f32 -0.5, %v75
    %v93 = vadd.f32 %v92, 1.0
    %v94 = vmul.f32 %v93, %v75
    %v95 = vand.u32 2147483647, %v75
    %vm96 = vcmp.lt.f32.partialorder %v95, 0.0004427343
    %v97 = vsel %vm96, %v94, %v91
    %v98 = vadd.f32 %v78, %v88
    %v99 = vadd.f32 %v79, %v97
    %v100 = vadd.f32 %v73, 1.0
    %v101 = vadd.f32 %v75, 1.0
    %v102 = vrcp.pop %v100
    %v103 = vrcp.pop %v101
    %vm104 = vcmp.le.f32.partialorder %v66, 0.0
    %vm105 = vcmp.le.f32.partialorder %v67, 0.0
    %v106 = vmul.f32 %v73, %v102
    %v107 = vmul.f32 %v75, %v103
    %v108 = vsel %vm104, %v102, %v106
    %v109 = vsel %vm105, %v103, %v107
    %v110 = vmul.f32 %v108, %v108
    %v111 = vmul.f32 %v109, %v109
    %v112 = vmul.f32 %v110, %v98
    %v113 = vmul.f32 %v111, %v99
    %v114 = vsel %vm58, %v112, 0.0
    %v115 = vsel %vm59, %v113, 0.0
    %v116 = vsel %vm58, 1, 0
    %v117 = vsel %vm59, 1, 0
    %v118 = vcvt.s32.f32 %v116
    %v119 = vcvt.s32.f32 %v117
    %vm120 = vcmask 1041408
    %v121 = vsel %vm120, %v114, 0.0
    %v122 = vsel %vm120, %v115, 0.0
    %v123 = vadd.f32 %v121, %v122
    %v124 = vsel %vm120, %v118, 0.0
    %v125 = vsel %vm120, %v119, 0.0
    %v126 = vadd.f32 %v124, %v125
    %v127 = vld [vmem:[#allocation7] sm:$0x3]
    %v128 = vadd.f32 %v127, %v123
    %129 = vst [vmem:[#allocation7] sm:$0x3] %v128
    %v130 = vld [vmem:[#allocation8] sm:$0x3]
    %v131 = vadd.f32 %v130, %v126
    %132 = vst [vmem:[#allocation8] sm:$0x3] %v131
    // Predicated region
    $region22: #{tpu_custom_call.1} parent=1 // pred_check
      _
    $region23: #{tpu_custom_call.1} parent=1 // pred_check_branch
      %134 = sbr.rel (0) target = $region25
    $region24: #{tpu_custom_call.1} parent=1 // pred_region
      %136 = vsyncadd [#allocation4], 0
      %s138 = sshll.u32 [#allocation7], 4
      %s139 = int_to_ptr.vmem [resolvable:$true] %s138
      %s140 = sshll.u32 %s2, 4
      %s141 = int_to_ptr.hbm [resolvable:$true] %s140
      %143 = dma.vmem_to_hbm [thread:$0]  %s139, 32, %s141, [#allocation4]
    $region25: #{tpu_custom_call.1} parent=1 // pred_fallthru
      _
    // Predicated region
    $region26: #{tpu_custom_call.1} parent=1 // pred_check
      _
    $region27: #{tpu_custom_call.1} parent=1 // pred_check_branch
      %145 = sbr.rel (0) target = $region29
    $region28: #{tpu_custom_call.1} parent=1 // pred_region
      %147 = vsyncadd [#allocation9], 0
      %s149 = sshll.u32 [#allocation8], 4
      %s150 = int_to_ptr.vmem [resolvable:$true] %s149
      %s151 = sshll.u32 %s3, 4
      %s152 = int_to_ptr.hbm [resolvable:$true] %s151
      %154 = dma.vmem_to_hbm [thread:$0]  %s150, 32, %s152, [#allocation9]
    $region29: #{tpu_custom_call.1} parent=1 // pred_fallthru
      _
    // Predicated region
    $region30: #{tpu_custom_call.1} parent=1 // pred_check
      _
    $region31: #{tpu_custom_call.1} parent=1 // pred_check_branch
      %156 = sbr.rel (0) target = $region33
    $region32: #{tpu_custom_call.1} parent=1 // pred_region
      %158 = dma.done [#allocation4], 32
    $region33: #{tpu_custom_call.1} parent=1 // pred_fallthru
      _
    // Predicated region
    $region34: #{tpu_custom_call.1} parent=1 // pred_check
      _
    $region35: #{tpu_custom_call.1} parent=1 // pred_check_branch
      %160 = sbr.rel (0) target = $region37
    $region36: #{tpu_custom_call.1} parent=1 // pred_region
      %162 = dma.done [#allocation9], 32
    $region37: #{tpu_custom_call.1} parent=1 // pred_fallthru
      _
    %163 = vsyncpa [#allocation3], 1
    %164 = vsyncpa [#allocation6], 1
    %165 = vsyncpa [#allocation4], 1
    %166 = vsyncpa [#allocation9], 1

</llo_original>
